<compile_context>
chip_gen: v7x
topology: tpu7x:2x2x1
jax: 0.10.0
libtpu: 0.0.40
codegen_flags: <defaults>
</compile_context>

<pallas_src>
import jax
import jax.numpy as jnp
from jax.experimental import pallas as pl
from jax.experimental.pallas import tpu as pltpu


# ----------------------------------------------------------------------------
# Pallas kernel — single invocation, everything VMEM/SMEM resident.
#   p_ref: (CKK, N*HW)  bf16  im2col patches (contraction x flattened n,h,w)
#   w_ref: (Cout, CKK)  bf16  flattened conv weights
#   b_ref: (Cout, 1)    f32   conv bias (column, broadcasts over lanes)
#   a_ref: (1, 1)       f32   scalar PReLU slope (SMEM)
#   o_ref: (Cout, N*HW) f32   lane-dense output
# ----------------------------------------------------------------------------
def _post_block_kernel(p_ref, w_ref, b_ref, a_ref, o_ref):
    acc = jnp.dot(w_ref[...], p_ref[...],
                  preferred_element_type=jnp.float32)        # (Cout, N*HW) f32
    acc = acc + b_ref[...]                                   # (Cout, 1) bcast
    a = a_ref[0, 0]                                          # scalar slope
    o_ref[...] = jnp.where(acc >= 0, acc, a * acc).astype(o_ref.dtype)


def conv_prelu_pallas(x_nchw, w_oihw, bias, prelu_a, *, stride, pad):
    """Fused conv2d + bias + scalar PReLU. Returns (Cout, N*Hout*Wout) f32."""
    N, Cin, H, W = x_nchw.shape
    Cout, _, K, _ = w_oihw.shape
    Hout = (H + 2 * pad - K) // stride + 1
    Wout = (W + 2 * pad - K) // stride + 1
    HW = Hout * Wout
    NHW = N * HW
    CKK = Cin * K * K
    out_dtype = jnp.float32

    # --- wrapper-side im2col in bf16 (pre-stage the K*K shifted taps once) ---
    x_pad = jnp.pad(x_nchw.astype(jnp.bfloat16),
                    ((0, 0), (0, 0), (pad, pad), (pad, pad)))
    taps = []
    for kh in range(K):
        for kw in range(K):
            taps.append(x_pad[:, :,
                              kh:kh + (Hout - 1) * stride + 1:stride,
                              kw:kw + (Wout - 1) * stride + 1:stride])
    # (KK, N, Cin, Ho, Wo) -> (Cin, KK, N, Ho, Wo) -> (Cin*K*K, N*Ho*Wo)
    patches = jnp.stack(taps, axis=0)
    patches = jnp.transpose(patches, (2, 0, 1, 3, 4)).reshape(CKK, NHW)

    # Weight flattened to (cin, kh, kw) contraction order -> matches `patches`.
    w_flat = w_oihw.reshape(Cout, CKK).astype(jnp.bfloat16)
    b_col = bias.reshape(Cout, 1).astype(jnp.float32)
    a2 = jnp.asarray(prelu_a, jnp.float32).reshape(1, 1)     # scalar slope only

    out = pl.pallas_call(
        _post_block_kernel,
        out_shape=jax.ShapeDtypeStruct((Cout, NHW), out_dtype),
        in_specs=[
            pl.BlockSpec(memory_space=pltpu.VMEM),   # patches (whole array)
            pl.BlockSpec(memory_space=pltpu.VMEM),   # weights
            pl.BlockSpec(memory_space=pltpu.VMEM),   # bias column
            pl.BlockSpec(memory_space=pltpu.SMEM),   # PReLU slope (scalar)
        ],
        out_specs=pl.BlockSpec(memory_space=pltpu.VMEM),
    )(patches, w_flat, b_col, a2)

    return out, Hout, Wout


def pixel_shuffle_nchw(y, r):
    """torch.nn.PixelShuffle(r) on NCHW tensors (pure layout glue)."""
    N, C, H, W = y.shape
    Co = C // (r * r)
    y = y.reshape(N, Co, r, r, H, W)
    y = jnp.transpose(y, (0, 1, 4, 2, 5, 3))
    return y.reshape(N, Co, H * r, W * r)


def post_block(x_nchw, params, *, stride, pad):
    """Forward of postBlock: conv -> pixelshuffle(2) -> prelu (scalar slope)."""
    # Scalar-slope guard: fusing PReLU before the shuffle is only exact for
    # nn.PReLU() default (a single shared slope).
    assert jnp.asarray(params["a"]).size == 1, "per-channel PReLU not supported"
    N = x_nchw.shape[0]
    Cout = params["w"].shape[0]
    r = 2
    Co = Cout // (r * r)

    y, Hout, Wout = conv_prelu_pallas(x_nchw, params["w"], params["b"],
                                      params["a"], stride=stride, pad=pad)
    # Kernel output is (Cout, N*HW).  One combined reshape/transpose does both
    # the batch-unfold and PixelShuffle(2):
    #   (Co, r1, r2, N, H, W) -> (N, Co, H, r1, W, r2) -> (N, Co, H*r, W*r)
    y = y.reshape(Co, r, r, N, Hout, Wout)
    y = jnp.transpose(y, (3, 0, 4, 1, 5, 2))
    y = y.reshape(N, Co, Hout * r, Wout * r)
    return y.astype(x_nchw.dtype)


# ----------------------------------------------------------------------------
# Reference (plain JAX, f32) for correctness check.
# ----------------------------------------------------------------------------
def post_block_ref(x_nchw, params, *, stride, pad):
    y = jax.lax.conv_general_dilated(
        x_nchw, params["w"], window_strides=(stride, stride),
        padding=[(pad, pad), (pad, pad)],
        dimension_numbers=("NCHW", "OIHW", "NCHW"))
    y = y + params["b"].reshape(1, -1, 1, 1)
    y = pixel_shuffle_nchw(y, 2)
    a = params["a"]
    return jnp.where(y >= 0, y, a * y)


if __name__ == "__main__":
    # postBlock(in_ch=4, out=16, kernel=3, stride=1, pd=1); PixelShuffle(2).
    N, Cin, H, W = 2, 4, 16, 16
    Cout, K, STRIDE, PAD = 16, 3, 1, 1

    key = jax.random.PRNGKey(0)
    kx, kw, kb = jax.random.split(key, 3)
    x = jax.random.normal(kx, (N, Cin, H, W), jnp.float32)
    params = {
        "w": 0.1 * jax.random.normal(kw, (Cout, Cin, K, K), jnp.float32),
        "b": 0.1 * jax.random.normal(kb, (Cout,), jnp.float32),
        "a": jnp.float32(0.25),  # nn.PReLU() default init
    }

    out = post_block(x, params, stride=STRIDE, pad=PAD)
    out = jax.block_until_ready(out)

    ref = post_block_ref(x, params, stride=STRIDE, pad=PAD)
    assert out.shape == (N, Cout // 4, H * 2, W * 2), out.shape
    # bf16 matmul operands (f32 accumulate): relax tolerance vs. the f32 ref.
    assert jnp.allclose(out, ref, rtol=2e-2, atol=2e-2), "mismatch vs reference"

    print("KERNEL_OK")
</pallas_src>

<mosaic_0001>
module attributes {stable_mosaic.version = 11 : i64} {
  func.func @_post_block_kernel(%arg0: memref<36x512xbf16, #tpu.memory_space<vmem>>, %arg1: memref<16x36xbf16, #tpu.memory_space<vmem>>, %arg2: memref<16x1xf32, #tpu.memory_space<vmem>>, %arg3: memref<1x1xf32, #tpu.memory_space<smem>>, %arg4: memref<16x512xf32, #tpu.memory_space<vmem>>) attributes {dimension_semantics = [], scalar_prefetch = 0 : i64, scratch_operands = 0 : i64, tpu.core_type = #tpu.core_type<tc>} {
    %c0 = arith.constant 0 : index
    %c0_0 = arith.constant 0 : index
    %0 = vector.load %arg1[%c0, %c0_0] : memref<16x36xbf16, #tpu.memory_space<vmem>>, vector<16x36xbf16>
    %c0_1 = arith.constant 0 : index
    %c0_2 = arith.constant 0 : index
    %1 = vector.load %arg0[%c0_1, %c0_2] : memref<36x512xbf16, #tpu.memory_space<vmem>>, vector<36x512xbf16>
    %cst = arith.constant dense<0.000000e+00> : vector<16x512xf32>
    %2 = tpu.matmul %0, %1, %cst {dimension_numbers = #tpu.dot_dimension_numbers<[1], [0], [0], [1], [0, 0, 1, 1], [], []>} : vector<16x36xbf16>, vector<36x512xbf16>, vector<16x512xf32> -> vector<16x512xf32>
    %c0_3 = arith.constant 0 : index
    %c0_4 = arith.constant 0 : index
    %3 = vector.load %arg2[%c0_3, %c0_4] : memref<16x1xf32, #tpu.memory_space<vmem>>, vector<16x1xf32>
    %4 = vector.broadcast %3 : vector<16x1xf32> to vector<16x512xf32>
    %5 = arith.addf %2, %4 : vector<16x512xf32>
    %c0_5 = arith.constant 0 : index
    %c0_6 = arith.constant 0 : index
    %6 = memref.load %arg3[%c0_5, %c0_6] : memref<1x1xf32, #tpu.memory_space<smem>>
    %cst_7 = arith.constant 0.000000e+00 : f32
    %7 = vector.broadcast %cst_7 : f32 to vector<16x512xf32>
    %8 = arith.cmpf oge, %5, %7 : vector<16x512xf32>
    %9 = vector.broadcast %6 : f32 to vector<16x512xf32>
    %10 = arith.mulf %9, %5 : vector<16x512xf32>
    %11 = arith.select %8, %5, %10 : vector<16x512xi1>, vector<16x512xf32>
    %c0_8 = arith.constant 0 : index
    %c0_9 = arith.constant 0 : index
    %12 = vector.load %arg4[%c0_8, %c0_9] : memref<16x512xf32, #tpu.memory_space<vmem>>, vector<16x512xf32>
    tpu.vector_store %arg4[%c0_8, %c0_9], %11 {strides = array<i32>} : memref<16x512xf32, #tpu.memory_space<vmem>>, vector<16x512xf32>,
    return
  }
}

</mosaic_0001>

<llo_original>
// kernel: tpu_custom_call.1
$region0: #{tpu_custom_call.1}
  #allocation0 [shape = 'u32[]', space=smem, size = 0x4, offset = 0x4, fixed_abs, tag = 'smem constant byte address 0x4 - core index']
  #allocation1 [shape = 'u32[144,128]{1,0:T(1,128)}', space=vmem, size = 0x12000, scoped, tag = 'internal scratch']
  #allocation2 [shape = 'f32[1,1]{1,0:T(1,128)S(6)}', space=smem, size = 0x200, scoped, tag = 'scoped memory for tpu_custom_call.1']
  %s0 = inlined_call_operand.hbm [shape: bf16[36,512], index: 0, kind: input, shape index: {}]
  %s1 = inlined_call_operand.vmem [shape: bf16[16,36], index: 1, kind: input, shape index: {}]
  %s2 = inlined_call_operand.vmem [shape: f32[16,1], index: 2, kind: input, shape index: {}]
  %s3 = inlined_call_operand.<no memory space> [shape: f32[1,1], index: 3, kind: input, shape index: {}]
  %s4 = inlined_call_operand.hbm [shape: f32[16,512], index: 4, kind: output, shape index: {}]
  %s5 = sld [smem:[#allocation0]]
  $region30: #{tpu_custom_call.1} parent=0
    _
  %s7 = ssub.s32 1, %s5
  %s8 = scalar_select 0, %s7, %s5
  %9 = sst [smem:[#allocation2]] %s3
  $region1: #{tpu_custom_call.1} parent=0
    #allocation3 [shape = 'u8[40960]{0}', space=vmem, size = 0xa000, scoped, tag = 'input window, operand 0, single buffered']
    #allocation4 [shape = 's32[1]{0}', space=sflag, size = 0x4, scoped, tag = 'scoped memory for tpu_custom_call.1']
    #allocation5 [shape = 's32[1]{0}', space=sflag, size = 0x4, scoped, tag = 'scoped memory for tpu_custom_call.1']
    #allocation6 [shape = 'u8[32768]{0}', space=vmem, size = 0x8000, scoped, tag = 'output window, operand 0, single buffered']
    %10 = vsyncpa [#allocation4], 0
    %11 = vsyncpa [#allocation5], 0
    // Predicated region
    $region2: #{tpu_custom_call.1} parent=1 // pred_check
      _
    $region3: #{tpu_custom_call.1} parent=1 // pred_check_branch
      %13 = sbr.rel (0) target = $region5
    $region4: #{tpu_custom_call.1} parent=1 // pred_region
      %s15 = ssub.s32 1280, 1280
      %16 = vsyncadd [#allocation4], %s15
      %s17 = sshll.u32 [#allocation3], 4
      %s18 = int_to_ptr.vmem [resolvable:$true] %s17
      %23 = dma.hbm_to_vmem [thread:$0]  %s0, 1280, %s18, [#allocation4], 256, 256, 16
    $region5: #{tpu_custom_call.1} parent=1 // pred_fallthru
      _
    // Predicated region
    $region6: #{tpu_custom_call.1} parent=1 // pred_check
      _
    $region7: #{tpu_custom_call.1} parent=1 // pred_check_branch
      %25 = sbr.rel (0) target = $region9
    $region8: #{tpu_custom_call.1} parent=1 // pred_region
      _
    $region9: #{tpu_custom_call.1} parent=1 // pred_fallthru
      _
    // Predicated region
    $region10: #{tpu_custom_call.1} parent=1 // pred_check
      _
    $region11: #{tpu_custom_call.1} parent=1 // pred_check_branch
      %27 = sbr.rel (0) target = $region13
    $region12: #{tpu_custom_call.1} parent=1 // pred_region
      _
    $region13: #{tpu_custom_call.1} parent=1 // pred_fallthru
      _
    // Predicated region
    $region14: #{tpu_custom_call.1} parent=1 // pred_check
      _
    $region15: #{tpu_custom_call.1} parent=1 // pred_check_branch
      %29 = sbr.rel (0) target = $region17
    $region16: #{tpu_custom_call.1} parent=1 // pred_region
      _
    $region17: #{tpu_custom_call.1} parent=1 // pred_fallthru
      _
    // Predicated region
    $region18: #{tpu_custom_call.1} parent=1 // pred_check
      _
    $region19: #{tpu_custom_call.1} parent=1 // pred_check_branch
      %31 = sbr.rel (0) target = $region21
    $region20: #{tpu_custom_call.1} parent=1 // pred_region
      %32 = dma.done [#allocation4], 1280
    $region21: #{tpu_custom_call.1} parent=1 // pred_fallthru
      _
    %v34 = vld [vmem:[%s1] sm:$0xf]
    %v35 = vld [vmem:[%s1 + $0x4] sm:$0xf]
    %v36 = vld [vmem:[#allocation3] sm:$0xff]
    %v37 = vld [vmem:[#allocation3 + $0x8] sm:$0xff]
    %v38 = vld [vmem:[#allocation3 + $0x10] sm:$0xff]
    %v39 = vld [vmem:[#allocation3 + $0x18] sm:$0xff]
    %v40 = vld [vmem:[#allocation3 + $0x20] sm:$0xff]
    %v41 = vld [vmem:[#allocation3 + $0x28] sm:$0xff]
    %v42 = vld [vmem:[#allocation3 + $0x30] sm:$0xff]
    %v43 = vld [vmem:[#allocation3 + $0x38] sm:$0xff]
    %v44 = vld [vmem:[#allocation3 + $0x40] sm:$0x33]
    %v45 = vld [vmem:[#allocation3 + $0x48] sm:$0x33]
    %v46 = vld [vmem:[%s2] sm:$0xff]
    %v47 = vld [vmem:[%s2 + $0x8] sm:$0xff]
    %49 = vset.pattern.permute.xlu0 0
    %50 = vperm.xlu0 %49, %v46
    %v51 = vpop.permute.xlu0 %50
    %54 = vset.pattern.permute.xlu0 0
    %55 = vperm.xlu0 %54, %v47
    %v56 = vpop.permute.xlu0 %55
    %v60 = vunpack.c.l.b16 %v34
    %v61 = vunpack.c.l.b16 %v35
    %v62 = vpack.c.b16 %v61, %v60
    %v73 = vunpack.c.l.b16 %v36
    %v74 = vunpack.c.h.b16 %v36
    %v75 = vunpack.c.l.b16 %v37
    %v76 = vunpack.c.h.b16 %v37
    %v77 = vunpack.c.l.b16 %v38
    %v78 = vunpack.c.h.b16 %v38
    %v79 = vunpack.c.l.b16 %v39
    %v80 = vunpack.c.h.b16 %v39
    %v81 = vunpack.c.l.b16 %v40
    %v82 = vunpack.c.h.b16 %v40
    %v83 = vunpack.c.l.b16 %v41
    %v84 = vunpack.c.h.b16 %v41
    %v85 = vunpack.c.l.b16 %v42
    %v86 = vunpack.c.h.b16 %v42
    %v87 = vunpack.c.l.b16 %v43
    %v88 = vunpack.c.h.b16 %v43
    %v89 = vunpack.c.l.b16 %v44
    %v90 = vunpack.c.h.b16 %v44
    %v91 = vunpack.c.l.b16 %v45
    %v92 = vunpack.c.h.b16 %v45
    %v93 = vpack.c.b16 %v77, %v73
    %v94 = vpack.c.b16 %v78, %v74
    %v95 = vpack.c.b16 %v79, %v75
    %v96 = vpack.c.b16 %v80, %v76
    %v97 = vpack.c.b16 %v85, %v81
    %v98 = vpack.c.b16 %v86, %v82
    %v99 = vpack.c.b16 %v87, %v83
    %v100 = vpack.c.b16 %v88, %v84
    %v101 = vpack.c.b16 %v89, %v89
    %v102 = vpack.c.b16 %v90, %v90
    %v103 = vpack.c.b16 %v91, %v91
    %v104 = vpack.c.b16 %v92, %v92
    %vm113 = vcmask 293888
    %v115 = vsel %vm113, %v62, 0
    %vm117 = vcmask 1041408
    %v119 = vsel %vm117, %v101, 0
    %v122 = vsel %vm117, %v102, 0
    %v125 = vsel %vm117, %v103, 0
    %v128 = vsel %vm117, %v104, 0
    %130 = vmatprep.subr.bf16.mxu0 %v94
    %131 = vmatpush1.bf16.msra.mxu0 %v93
    %132 = vmatprep.subr.bf16.mxu0 %v98
    %133 = vmatpush1.bf16.msra.mxu0 %v97
    %134 = vmatprep.subr.bf16.mxu0 %v122
    %135 = vmatpush1.bf16.msra.mxu0 %v119
    %136 = vmatprep.subr.bf16.mxu0 0
    %137 = vmatpush1.bf16.msra.mxu0 0
    %138 = vmatprep.subr.bf16.mxu0 0
    %139 = vmatpush1.bf16.msra.mxu0 0
    %140 = vmatprep.subr.bf16.mxu0 0
    %141 = vmatpush1.bf16.msra.mxu0 0
    %142 = vmatprep.subr.bf16.mxu0 0
    %143 = vmatpush1.bf16.msra.mxu0 0
    %144 = vmatprep.subr.bf16.mxu0 0
    %145 = vmatpush1.bf16.msra.mxu0 0
    %146 = vmatprep.subr.bf16.mxu0 0
    %147 = vmatpush1.bf16.msra.mxu0 0
    %148 = vmatprep.subr.bf16.mxu0 0
    %149 = vmatpush1.bf16.msra.mxu0 0
    %150 = vmatprep.subr.bf16.mxu0 0
    %151 = vmatpush1.bf16.msra.mxu0 0
    %152 = vmatprep.subr.bf16.mxu0 0
    %153 = vmatpush1.bf16.msra.mxu0 0
    %154 = vmatprep.subr.bf16.mxu0 0
    %155 = vmatpush1.bf16.msra.mxu0 0
    %156 = vmatprep.subr.bf16.mxu0 0
    %157 = vmatpush1.bf16.msra.mxu0 0
    %158 = vmatprep.subr.bf16.mxu0 0
    %159 = vmatpush1.bf16.msra.mxu0 0
    %160 = vmatprep.subr.bf16.mxu0 0
    %161 = vmatpush1.bf16.msra.mxu0 0
    %162 = vmatprep.mubr.bf16.mxu0 0
    %163 = vmatmul.mubr.bf16.gmra.mrb[0].mxu0 %v115
    %v164 = vpop.f32.mrb[0].mxu0
    %v165 = vadd.f32 %v51, %v164
    %v166 = vpop.f32.mrb[0].mxu0
    %v167 = vadd.f32 %v51, %v166
    %v168 = vpop.f32.mrb[0].mxu0
    %v169 = vadd.f32 %v56, %v168
    %v170 = vpop.f32.mrb[0].mxu0
    %v171 = vadd.f32 %v56, %v170
    %172 = vdwg.mxu0
    %173 = vmatprep.subr.bf16.mxu0 %v96
    %174 = vmatpush1.bf16.msra.mxu0 %v95
    %175 = vmatprep.subr.bf16.mxu0 %v100
    %176 = vmatpush1.bf16.msra.mxu0 %v99
    %177 = vmatprep.subr.bf16.mxu0 %v128
    %178 = vmatpush1.bf16.msra.mxu0 %v125
    %179 = vmatprep.subr.bf16.mxu0 0
    %180 = vmatpush1.bf16.msra.mxu0 0
    %181 = vmatprep.subr.bf16.mxu0 0
    %182 = vmatpush1.bf16.msra.mxu0 0
    %183 = vmatprep.subr.bf16.mxu0 0
    %184 = vmatpush1.bf16.msra.mxu0 0
    %185 = vmatprep.subr.bf16.mxu0 0
    %186 = vmatpush1.bf16.msra.mxu0 0
    %187 = vmatprep.subr.bf16.mxu0 0
    %188 = vmatpush1.bf16.msra.mxu0 0
    %189 = vmatprep.subr.bf16.mxu0 0
    %190 = vmatpush1.bf16.msra.mxu0 0
    %191 = vmatprep.subr.bf16.mxu0 0
    %192 = vmatpush1.bf16.msra.mxu0 0
    %193 = vmatprep.subr.bf16.mxu0 0
    %194 = vmatpush1.bf16.msra.mxu0 0
    %195 = vmatprep.subr.bf16.mxu0 0
    %196 = vmatpush1.bf16.msra.mxu0 0
    %197 = vmatprep.subr.bf16.mxu0 0
    %198 = vmatpush1.bf16.msra.mxu0 0
    %199 = vmatprep.subr.bf16.mxu0 0
    %200 = vmatpush1.bf16.msra.mxu0 0
    %201 = vmatprep.subr.bf16.mxu0 0
    %202 = vmatpush1.bf16.msra.mxu0 0
    %203 = vmatprep.subr.bf16.mxu0 0
    %204 = vmatpush1.bf16.msra.mxu0 0
    %205 = vmatprep.mubr.bf16.mxu0 0
    %206 = vmatmul.mubr.bf16.gmra.mrb[0].mxu0 %v115
    %v207 = vpop.f32.mrb[0].mxu0
    %v208 = vadd.f32 %v51, %v207
    %v209 = vpop.f32.mrb[0].mxu0
    %v210 = vadd.f32 %v51, %v209
    %v211 = vpop.f32.mrb[0].mxu0
    %v212 = vadd.f32 %v56, %v211
    %v213 = vpop.f32.mrb[0].mxu0
    %v214 = vadd.f32 %v56, %v213
    %215 = vdwg.mxu0
    %s216 = sld [smem:[#allocation2]]
    %vm217 = vcmp.ge.f32.partialorder %v165, 0.0
    %vm218 = vcmp.ge.f32.partialorder %v167, 0.0
    %vm219 = vcmp.ge.f32.partialorder %v208, 0.0
    %vm220 = vcmp.ge.f32.partialorder %v210, 0.0
    %vm221 = vcmp.ge.f32.partialorder %v169, 0.0
    %vm222 = vcmp.ge.f32.partialorder %v171, 0.0
    %vm223 = vcmp.ge.f32.partialorder %v212, 0.0
    %vm224 = vcmp.ge.f32.partialorder %v214, 0.0
    %v225 = vstv %s216
    %v226 = vmul.f32 %v225, %v165
    %v227 = vmul.f32 %v225, %v167
    %v228 = vmul.f32 %v225, %v208
    %v229 = vmul.f32 %v225, %v210
    %v230 = vmul.f32 %v225, %v169
    %v231 = vmul.f32 %v225, %v171
    %v232 = vmul.f32 %v225, %v212
    %v233 = vmul.f32 %v225, %v214
    %v234 = vsel %vm217, %v165, %v226
    %v235 = vsel %vm218, %v167, %v227
    %v236 = vsel %vm219, %v208, %v228
    %v237 = vsel %vm220, %v210, %v229
    %v238 = vsel %vm221, %v169, %v230
    %v239 = vsel %vm222, %v171, %v231
    %v240 = vsel %vm223, %v212, %v232
    %v241 = vsel %vm224, %v214, %v233
    %242 = vst [vmem:[#allocation6] sm:$0xff] %v234
    %243 = vst [vmem:[#allocation6 + $0x8] sm:$0xff] %v235
    %244 = vst [vmem:[#allocation6 + $0x10] sm:$0xff] %v236
    %245 = vst [vmem:[#allocation6 + $0x18] sm:$0xff] %v237
    %246 = vst [vmem:[#allocation6 + $0x20] sm:$0xff] %v238
    %247 = vst [vmem:[#allocation6 + $0x28] sm:$0xff] %v239
    %248 = vst [vmem:[#allocation6 + $0x30] sm:$0xff] %v240
    %249 = vst [vmem:[#allocation6 + $0x38] sm:$0xff] %v241
    // Predicated region
    $region22: #{tpu_custom_call.1} parent=1 // pred_check
      _
    $region23: #{tpu_custom_call.1} parent=1 // pred_check_branch
      %251 = sbr.rel (0) target = $region25
    $region24: #{tpu_custom_call.1} parent=1 // pred_region
      %s253 = ssub.s32 1024, 1024
      %254 = vsyncadd [#allocation5], %s253
      %s255 = sshll.u32 [#allocation6], 4
      %s256 = int_to_ptr.vmem [resolvable:$true] %s255
      %261 = dma.vmem_to_hbm [thread:$0]  %s256, 1024, %s4, [#allocation5], 512, 512, 32
    $region25: #{tpu_custom_call.1} parent=1 // pred_fallthru
      _
    // Predicated region
    $region26: #{tpu_custom_call.1} parent=1 // pred_check
      _
    $region27: #{tpu_custom_call.1} parent=1 // pred_check_branch
      %263 = sbr.rel (0) target = $region29
    $region28: #{tpu_custom_call.1} parent=1 // pred_region
      %264 = dma.done [#allocation5], 1024
    $region29: #{tpu_custom_call.1} parent=1 // pred_fallthru
      _
    %265 = vsyncpa [#allocation4], 1
    %266 = vsyncpa [#allocation5], 1

</llo_original>
